<compile_context>
chip_gen: v7x
topology: tpu7x:2x2x1
jax: 0.10.0
libtpu: 0.0.40
codegen_flags: <defaults>
</compile_context>

<pallas_src>
import functools

import jax
import jax.numpy as jnp
import numpy as np
from jax import lax
from jax.experimental import pallas as pl
from jax.experimental.pallas import tpu as pltpu


def _wmse_kernel(x_ref, t_ref, s_ref, out_ref, acc_ref, *,
                 tb, n_inner, true_b, needs_mask):
    """Grid = (batch split, batch tile). acc holds a lane-dense (1, D) partial."""
    j = pl.program_id(0)          # batch split (parallel; one per TensorCore)
    i = pl.program_id(1)          # batch tile within the split (sequential)

    @pl.when(i == 0)
    def _init():
        acc_ref[...] = jnp.zeros_like(acc_ref)

    x = x_ref[...].astype(jnp.float32)            # (tb, D)
    t = t_ref[...].astype(jnp.float32)            # (tb, D)
    diff = x - t
    d2 = diff * diff                              # (x - t)^2
    neg = jnp.maximum(-x, 0.0)                    # clamp(-x, min=0)
    n2 = neg * neg

    if needs_mask:
        # (tb,1) row-validity predicate, broadcast select over lanes.  Keep it
        # a select (not a multiply) so stale / possibly-NaN rows of a partial
        # tile can never reach the accumulator (0*NaN == NaN on the MXU).
        row0 = (j * n_inner + i) * tb
        rows = lax.broadcasted_iota(jnp.int32, (tb, 1), 0) + row0
        valid = rows < true_b
        d2 = jnp.where(valid, d2, 0.0)
        n2 = jnp.where(valid, n2, 0.0)

    # Per-row scales prepared by the wrapper: col 0 = w/(B*D), col 1 =
    # non_neg_penalty_weight (both zero on padded rows).  The weighted row
    # reduction runs on the (otherwise idle) MXU: (tb,1)^T @ (tb,D) -> (1,D).
    scales = s_ref[...]                           # (tb, 2) float32
    dn = (((0,), (0,)), ((), ()))                 # contract dim 0 with dim 0
    part = lax.dot_general(scales[:, 0:1], d2, dn,
                           preferred_element_type=jnp.float32)
    part = part + lax.dot_general(scales[:, 1:2], n2, dn,
                                  preferred_element_type=jnp.float32)
    acc_ref[...] += part                          # (1, D)

    @pl.when(i == pl.num_programs(1) - 1)
    def _finalize():
        total = jnp.sum(acc_ref[...])             # single cross-lane reduce
        out_ref[...] = jnp.full(out_ref.shape, total, jnp.float32)


def weighted_mse_loss(inputs, weights, targets, *,
                      non_neg_penalty_weight=1.0, tb=None):
    """Pallas-TPU implementation of WeightedMSELoss.forward. Returns a scalar."""
    B, D = inputs.shape
    assert targets.shape == (B, D), (targets.shape, (B, D))
    assert weights.shape == (B,), (weights.shape, (B,))
    itemsize = jnp.dtype(inputs.dtype).itemsize

    # Generation-aware VMEM budget (v7x has only 64 MiB per TensorCore).
    try:
        vmem_cap = int(pltpu.get_tpu_info().vmem_capacity_bytes)
    except Exception:                                      # noqa: BLE001
        vmem_cap = 64 << 20                                # conservative (v7x)

    if tb is None:
        budget = min(vmem_cap // 3, 40 << 20)
        # Per batch-row VMEM cost: 2 streamed tensors x 2 pipeline buffers in
        # the native dtype, ~6 f32 whole-tile temporaries, plus the (tb,2)
        # scale block which lane-pads to 128 lanes (512 B/row x 2 buffers).
        per_row = D * (4 * itemsize + 24) + 1024
        tb = max(8, budget // per_row)
    tb = max(8, (int(tb) // 8) * 8)                  # sublane-aligned
    tb = min(tb, 2048)                               # vreg/temp pressure cap
    tb = min(tb, ((B + 7) // 8) * 8)                 # no point exceeding B

    n_blocks = -(-B // tb)                           # valid batch tiles
    n_split = 2 if n_blocks >= 2 else 1              # use both v7x TCs
    n_inner = -(-n_blocks // n_split)
    covered = n_split * n_inner * tb
    needs_mask = covered != B

    # Fold 1/(B*D) and the penalty weight into a per-row, lane-compact (B,2)
    # scale table (zero-padded past B); O(B) prep, no O(B*D) wrapper pass.
    inv_n = 1.0 / float(B * D)
    w_col = (weights.astype(jnp.float32) * inv_n).reshape(B, 1)
    p_col = jnp.full((B, 1), float(non_neg_penalty_weight), jnp.float32)
    scales = jnp.concatenate([w_col, p_col], axis=1)
    if covered != B:
        scales = jnp.pad(scales, ((0, covered - B), (0, 0)))

    last_block = n_blocks - 1

    def xt_map(j, i):
        # Clamp so the (possibly) one extra grid step of an odd split re-reads
        # the last valid block; the row mask zeroes its contribution.
        return (jnp.minimum(j * n_inner + i, last_block), 0)

    def s_map(j, i):
        return (j * n_inner + i, 0)

    kernel = functools.partial(_wmse_kernel, tb=tb, n_inner=n_inner,
                               true_b=B, needs_mask=needs_mask)

    need = (4 * tb * D * itemsize        # double-buffered x and t tiles
            + 6 * tb * D * 4             # in-kernel f32 temporaries (estimate)
            + 2 * tb * 512               # lane-padded (tb,2) scales, 2 buffers
            + (1 << 20))                 # accumulator, output, slack
    cap = max(32 << 20, vmem_cap - (12 << 20))       # ~52 MiB v7x, ~116 v5e/v6e
    vmem_limit = int(min(max(32 << 20, need + (8 << 20)), cap))

    out = pl.pallas_call(
        kernel,
        out_shape=jax.ShapeDtypeStruct((1, 128 * n_split), jnp.float32),
        grid_spec=pltpu.PrefetchScalarGridSpec(
            num_scalar_prefetch=0,
            grid=(n_split, n_inner),
            in_specs=[
                pl.BlockSpec((tb, D), xt_map),       # inputs tile (native dtype)
                pl.BlockSpec((tb, D), xt_map),       # targets tile
                pl.BlockSpec((tb, 2), s_map),        # per-row scales
            ],
            # Lane-dense per-split output block; each split writes its own.
            out_specs=pl.BlockSpec((1, 128), lambda j, i: (0, j)),
            scratch_shapes=[pltpu.VMEM((1, D), jnp.float32)],
        ),
        compiler_params=pltpu.CompilerParams(
            # Outer split is independent (sharded across TCs on v7x); the
            # inner axis carries the accumulator -> must stay sequential.
            dimension_semantics=("parallel", "arbitrary"),
            vmem_limit_bytes=vmem_limit,
        ),
    )(inputs, targets, scales)

    return jnp.sum(out.reshape(n_split, 128)[:, 0])


def _reference(inputs, weights, targets, non_neg_penalty_weight=1.0):
    inputs = inputs.astype(jnp.float32)
    targets = targets.astype(jnp.float32)
    weights = weights.astype(jnp.float32)
    mse = (inputs - targets) ** 2
    wmse = mse * weights[:, None]
    loss = wmse.mean()
    pen = non_neg_penalty_weight * jnp.sum(jnp.maximum(-inputs, 0.0) ** 2)
    return loss + pen


def _check(name, got, ref, tol=1e-4):
    if not np.allclose(np.asarray(got), np.asarray(ref), rtol=tol, atol=tol):
        raise AssertionError(f"{name} mismatch: pallas={got} ref={ref}")


if __name__ == "__main__":
    key = jax.random.PRNGKey(0)
    ks = jax.random.split(key, 12)

    # Case 1: small aligned shapes -> single grid step, no masking.
    B, D = 16, 128
    x = jax.random.normal(ks[0], (B, D), dtype=jnp.float32)
    t = jax.random.normal(ks[1], (B, D), dtype=jnp.float32)
    w = jax.random.uniform(ks[2], (B,), dtype=jnp.float32)
    got = jax.block_until_ready(
        weighted_mse_loss(x, w, t, non_neg_penalty_weight=1.0))
    _check("case1", got, _reference(x, w, t, 1.0))

    # Case 2: ragged shapes (row mask + non-128-multiple feature dim).
    B2, D2 = 10, 200
    x2 = jax.random.normal(ks[3], (B2, D2), dtype=jnp.float32)
    t2 = jax.random.normal(ks[4], (B2, D2), dtype=jnp.float32)
    w2 = jax.random.uniform(ks[5], (B2,), dtype=jnp.float32)
    got2 = jax.block_until_ready(
        weighted_mse_loss(x2, w2, t2, non_neg_penalty_weight=0.5))
    _check("case2", got2, _reference(x2, w2, t2, 0.5))

    # Case 3: forced small tile -> 2-way split, odd block count (clamped
    # duplicate block), partial last tile. Exercises the multi-core path.
    B3, D3 = 40, 96
    x3 = jax.random.normal(ks[6], (B3, D3), dtype=jnp.float32)
    t3 = jax.random.normal(ks[7], (B3, D3), dtype=jnp.float32)
    w3 = jax.random.uniform(ks[8], (B3,), dtype=jnp.float32)
    got3 = jax.block_until_ready(
        weighted_mse_loss(x3, w3, t3, non_neg_penalty_weight=2.0, tb=8))
    _check("case3", got3, _reference(x3, w3, t3, 2.0))

    # Case 4: bf16 inputs streamed in their native dtype, upcast in-kernel.
    B4, D4 = 24, 256
    x4 = jax.random.normal(ks[9], (B4, D4), dtype=jnp.bfloat16)
    t4 = jax.random.normal(ks[10], (B4, D4), dtype=jnp.bfloat16)
    w4 = jax.random.uniform(ks[11], (B4,), dtype=jnp.float32)
    got4 = jax.block_until_ready(
        weighted_mse_loss(x4, w4, t4, non_neg_penalty_weight=1.0))
    _check("case4", got4, _reference(x4, w4, t4, 1.0), tol=1e-3)

    print("KERNEL_OK")
</pallas_src>

<mosaic_0001>
module attributes {stable_mosaic.version = 11 : i64} {
  func.func @_wmse_kernel(%arg0: i32, %arg1: i32, %arg2: memref<16x128xf32, #tpu.memory_space<vmem>>, %arg3: memref<16x128xf32, #tpu.memory_space<vmem>>, %arg4: memref<16x2xf32, #tpu.memory_space<vmem>>, %arg5: memref<1x128xf32, #tpu.memory_space<vmem>>, %arg6: memref<1x128xf32, #tpu.memory_space<vmem>>) attributes {dimension_semantics = [#tpu.dimension_semantics<parallel>, #tpu.dimension_semantics<arbitrary>], iteration_bounds = array<i64: 1, 1>, scalar_prefetch = 0 : i64, scratch_operands = 1 : i64, tpu.core_type = #tpu.core_type<tc>, window_params = [{transform_indices = @transform_0, window_bounds = array<i64: 16, 128>}, {transform_indices = @transform_1, window_bounds = array<i64: 16, 128>}, {transform_indices = @transform_2, window_bounds = array<i64: 16, 2>}, {transform_indices = @transform_3, window_bounds = array<i64: 1, 128>}]} {
    %c0_i32 = arith.constant 0 : i32
    %0 = arith.cmpi eq, %arg1, %c0_i32 : i32
    %1 = arith.extui %0 : i1 to i32
    %c0_i32_0 = arith.constant 0 : i32
    %2 = arith.cmpi ne, %1, %c0_i32_0 : i32
    scf.if %2 {
      %cst_15 = arith.constant 0.000000e+00 : f32
      %24 = vector.broadcast %cst_15 : f32 to vector<1x128xf32>
      %c0_16 = arith.constant 0 : index
      %c0_17 = arith.constant 0 : index
      %25 = vector.load %arg6[%c0_16, %c0_17] : memref<1x128xf32, #tpu.memory_space<vmem>>, vector<1x128xf32>
      tpu.vector_store %arg6[%c0_16, %c0_17], %24 {strides = array<i32>} : memref<1x128xf32, #tpu.memory_space<vmem>>, vector<1x128xf32>,
    } else {
    }
    %c0 = arith.constant 0 : index
    %c0_1 = arith.constant 0 : index
    %3 = vector.load %arg2[%c0, %c0_1] : memref<16x128xf32, #tpu.memory_space<vmem>>, vector<16x128xf32>
    %c0_2 = arith.constant 0 : index
    %c0_3 = arith.constant 0 : index
    %4 = vector.load %arg3[%c0_2, %c0_3] : memref<16x128xf32, #tpu.memory_space<vmem>>, vector<16x128xf32>
    %5 = arith.subf %3, %4 : vector<16x128xf32>
    %6 = arith.mulf %5, %5 : vector<16x128xf32>
    %cst = arith.constant 0.000000e+00 : f32
    %7 = vector.broadcast %cst : f32 to vector<16x128xf32>
    %8 = arith.subf %7, %3 : vector<16x128xf32>
    %cst_4 = arith.constant 0.000000e+00 : f32
    %9 = vector.broadcast %cst_4 : f32 to vector<16x128xf32>
    %10 = arith.maximumf %8, %9 : vector<16x128xf32>
    %11 = arith.mulf %10, %10 : vector<16x128xf32>
    %c0_5 = arith.constant 0 : index
    %c0_6 = arith.constant 0 : index
    %12 = vector.load %arg4[%c0_5, %c0_6] : memref<16x2xf32, #tpu.memory_space<vmem>>, vector<16x2xf32>
    %13 = vector.extract_strided_slice %12 {offsets = [0, 0], sizes = [16, 1], strides = [1, 1]} : vector<16x2xf32> to vector<16x1xf32>
    %cst_7 = arith.constant dense<0.000000e+00> : vector<1x128xf32>
    %14 = tpu.matmul %13, %6, %cst_7 {dimension_numbers = #tpu.dot_dimension_numbers<[0], [0], [1], [1], [0, 1, 1, 1], [], []>} : vector<16x1xf32>, vector<16x128xf32>, vector<1x128xf32> -> vector<1x128xf32>
    %15 = vector.extract_strided_slice %12 {offsets = [0, 1], sizes = [16, 1], strides = [1, 1]} : vector<16x2xf32> to vector<16x1xf32>
    %cst_8 = arith.constant dense<0.000000e+00> : vector<1x128xf32>
    %16 = tpu.matmul %15, %11, %cst_8 {dimension_numbers = #tpu.dot_dimension_numbers<[0], [0], [1], [1], [0, 1, 1, 1], [], []>} : vector<16x1xf32>, vector<16x128xf32>, vector<1x128xf32> -> vector<1x128xf32>
    %17 = arith.addf %14, %16 : vector<1x128xf32>
    %c0_9 = arith.constant 0 : index
    %c0_10 = arith.constant 0 : index
    %18 = vector.load %arg6[%c0_9, %c0_10] : memref<1x128xf32, #tpu.memory_space<vmem>>, vector<1x128xf32>
    %19 = arith.addf %18, %17 : vector<1x128xf32>
    %c0_11 = arith.constant 0 : index
    %c0_12 = arith.constant 0 : index
    %20 = vector.load %arg6[%c0_11, %c0_12] : memref<1x128xf32, #tpu.memory_space<vmem>>, vector<1x128xf32>
    tpu.vector_store %arg6[%c0_11, %c0_12], %19 {strides = array<i32>} : memref<1x128xf32, #tpu.memory_space<vmem>>, vector<1x128xf32>,
    %c0_i32_13 = arith.constant 0 : i32
    %21 = arith.cmpi eq, %arg1, %c0_i32_13 : i32
    %22 = arith.extui %21 : i1 to i32
    %c0_i32_14 = arith.constant 0 : i32
    %23 = arith.cmpi ne, %22, %c0_i32_14 : i32
    scf.if %23 {
      %c0_15 = arith.constant 0 : index
      %c0_16 = arith.constant 0 : index
      %24 = vector.load %arg6[%c0_15, %c0_16] : memref<1x128xf32, #tpu.memory_space<vmem>>, vector<1x128xf32>
      %25 = vector.shape_cast %24 : vector<1x128xf32> to vector<1x1x128xf32>
      %cst_17 = arith.constant dense<0.000000e+00> : vector<1xf32>
      %26 = vector.multi_reduction <add>, %25, %cst_17 [1, 2] : vector<1x1x128xf32> to vector<1xf32>
      %27 = vector.shape_cast %26 : vector<1xf32> to vector<1x1x1xf32>
      %28 = vector.extract %27[0, 0, 0] : f32 from vector<1x1x1xf32>
      %29 = vector.broadcast %28 : f32 to vector<1x128xf32>
      %c0_18 = arith.constant 0 : index
      %c0_19 = arith.constant 0 : index
      %30 = vector.load %arg5[%c0_18, %c0_19] : memref<1x128xf32, #tpu.memory_space<vmem>>, vector<1x128xf32>
      tpu.vector_store %arg5[%c0_18, %c0_19], %29 {strides = array<i32>} : memref<1x128xf32, #tpu.memory_space<vmem>>, vector<1x128xf32>,
    } else {
    }
    return
  }
  func.func @transform_0(%arg0: i32, %arg1: i32) -> (i32, i32) {
    %c1_i32 = arith.constant 1 : i32
    %0 = arith.muli %arg0, %c1_i32 : i32
    %1 = arith.addi %0, %arg1 : i32
    %c0_i32 = arith.constant 0 : i32
    %2 = arith.minsi %1, %c0_i32 : i32
    %c0_i32_0 = arith.constant 0 : i32
    %c0_i32_1 = arith.constant 0 : i32
    return %2, %c0_i32_0 : i32, i32
  }
  func.func @transform_1(%arg0: i32, %arg1: i32) -> (i32, i32) {
    %c1_i32 = arith.constant 1 : i32
    %0 = arith.muli %arg0, %c1_i32 : i32
    %1 = arith.addi %0, %arg1 : i32
    %c0_i32 = arith.constant 0 : i32
    %2 = arith.minsi %1, %c0_i32 : i32
    %c0_i32_0 = arith.constant 0 : i32
    %c0_i32_1 = arith.constant 0 : i32
    return %2, %c0_i32_0 : i32, i32
  }
  func.func @transform_2(%arg0: i32, %arg1: i32) -> (i32, i32) {
    %c1_i32 = arith.constant 1 : i32
    %0 = arith.muli %arg0, %c1_i32 : i32
    %1 = arith.addi %0, %arg1 : i32
    %c0_i32 = arith.constant 0 : i32
    %c0_i32_0 = arith.constant 0 : i32
    return %1, %c0_i32 : i32, i32
  }
  func.func @transform_3(%arg0: i32, %arg1: i32) -> (i32, i32) {
    %c0_i32 = arith.constant 0 : i32
    %c0_i32_0 = arith.constant 0 : i32
    return %c0_i32, %arg0 : i32, i32
  }
}

</mosaic_0001>

<llo_original>
// kernel: tpu_custom_call.1
$region0: #{tpu_custom_call.1}
  #allocation0 [shape = 'u32[]', space=smem, size = 0x4, offset = 0x4, fixed_abs, tag = 'smem constant byte address 0x4 - core index']
  #allocation1 [shape = 'u32[144,128]{1,0:T(1,128)}', space=vmem, size = 0x12000, scoped, tag = 'internal scratch']
  #allocation2 [shape = 'f32[1,128]{1,0:T(1,128)}', space=vmem, size = 0x200, scoped, tag = 'scratch operand']
  %s0 = inlined_call_operand.vmem [shape: f32[16,128], index: 0, kind: input, shape index: {}]
  %s1 = inlined_call_operand.hbm [shape: f32[16,128], index: 1, kind: input, shape index: {}]
  %s2 = inlined_call_operand.vmem [shape: f32[16,2], index: 2, kind: input, shape index: {}]
  %s3 = inlined_call_operand.hbm [shape: f32[1,128], index: 3, kind: output, shape index: {}]
  %s4 = sld [smem:[#allocation0]]
  $region34: #{tpu_custom_call.1} parent=0
    _
  %s6 = ssub.s32 1, %s4
  %s7 = scalar_select 0, %s6, %s4
  $region1: #{tpu_custom_call.1} parent=0
    #allocation3 [shape = 'u8[8192]{0}', space=vmem, size = 0x2000, scoped, tag = 'input window, operand 1, single buffered']
    #allocation4 [shape = 's32[1]{0}', space=sflag, size = 0x4, scoped, tag = 'scoped memory for tpu_custom_call.1']
    #allocation5 [shape = 's32[1]{0}', space=sflag, size = 0x4, scoped, tag = 'scoped memory for tpu_custom_call.1']
    #allocation6 [shape = 'u8[512]{0}', space=vmem, size = 0x400, scoped, tag = 'output window, operand 0, single buffered']
    %8 = vsyncpa [#allocation4], 0
    %9 = vsyncpa [#allocation5], 0
    // Predicated region
    $region2: #{tpu_custom_call.1} parent=1 // pred_check
      _
    $region3: #{tpu_custom_call.1} parent=1 // pred_check_branch
      %11 = sbr.rel (0) target = $region5
    $region4: #{tpu_custom_call.1} parent=1 // pred_region
      %s12 = sadd.s32 0, 0
      %p13 = scmp.lt.s32.totalorder %s12, 0
      %s14 = scalar_select %p13, %s12, 0
      %s15 = smul.u32 2, %s14
      %p16 = scmp.lt.s32.totalorder %s15, 1
      %s17 = scalar_select %p16, %s15, 1
      %s18 = smul.addr %s17, 8
      %s19 = scalar_lea.vmem %s0, %s18
      %s20 = sadd.s32 0, 0
      %p21 = scmp.lt.s32.totalorder %s20, 0
      %s22 = scalar_select %p21, %s20, 0
      %s23 = smul.u32 2, %s22
    $region5: #{tpu_custom_call.1} parent=1 // pred_fallthru
      _
    // Predicated region
    $region6: #{tpu_custom_call.1} parent=1 // pred_check
      _
    $region7: #{tpu_custom_call.1} parent=1 // pred_check_branch
      %25 = sbr.rel (0) target = $region9
    $region8: #{tpu_custom_call.1} parent=1 // pred_region
      %s26 = sadd.s32 0, 0
      %p27 = scmp.lt.s32.totalorder %s26, 0
      %s28 = scalar_select %p27, %s26, 0
      %s29 = smul.u32 2, %s28
      %s31 = ssub.s32 256, 256
      %32 = vsyncadd [#allocation4], %s31
      %s33 = smul.addr %s29, 128
      %s34 = scalar_lea.hbm %s1, %s33
      %s35 = sshll.u32 [#allocation3], 4
      %s36 = int_to_ptr.vmem [resolvable:$true] %s35
      %41 = dma.hbm_to_vmem [thread:$0]  %s34, 256, %s36, [#allocation4], 128, 128, 8
    $region9: #{tpu_custom_call.1} parent=1 // pred_fallthru
      _
    // Predicated region
    $region10: #{tpu_custom_call.1} parent=1 // pred_check
      _
    $region11: #{tpu_custom_call.1} parent=1 // pred_check_branch
      %43 = sbr.rel (0) target = $region13
    $region12: #{tpu_custom_call.1} parent=1 // pred_region
      %s44 = sadd.s32 0, 0
      %s45 = smul.u32 2, %s44
      %p46 = scmp.lt.s32.totalorder %s45, 1
      %s47 = scalar_select %p46, %s45, 1
      %s48 = smul.addr %s47, 8
      %s49 = scalar_lea.vmem %s2, %s48
      %s50 = sadd.s32 0, 0
      %s51 = smul.u32 2, %s50
    $region13: #{tpu_custom_call.1} parent=1 // pred_fallthru
      _
    // Predicated region
    $region14: #{tpu_custom_call.1} parent=1 // pred_check
      _
    $region15: #{tpu_custom_call.1} parent=1 // pred_check_branch
      %53 = sbr.rel (0) target = $region17
    $region16: #{tpu_custom_call.1} parent=1 // pred_region
      %54 = dma.done [#allocation4], 256
    $region17: #{tpu_custom_call.1} parent=1 // pred_fallthru
      _
    %s55 = sadd.s32 0, 0
    %p56 = scmp.lt.s32.totalorder %s55, 0
    %s57 = scalar_select %p56, %s55, 0
    %s58 = smul.u32 2, %s57
    %p59 = scmp.lt.s32.totalorder %s58, 1
    %s60 = scalar_select %p59, %s58, 1
    %s61 = smul.addr %s60, 8
    %s62 = scalar_lea.vmem %s0, %s61
    %s63 = sadd.s32 0, 0
    %s64 = smul.u32 2, %s63
    %p65 = scmp.lt.s32.totalorder %s64, 1
    %s66 = scalar_select %p65, %s64, 1
    %s67 = smul.addr %s66, 8
    %s68 = scalar_lea.vmem %s2, %s67
    %s69 = sadd.s32 0, 0
    %p70 = scmp.lt.s32.totalorder %s69, 0
    %s71 = scalar_select %p70, %s69, 0
    %s72 = smul.u32 2, %s71
    %p73 = scmp.lt.s32.totalorder %s72, 1
    %s74 = scalar_select %p73, %s72, 1
    %s75 = smul.addr %s74, 8
    %s76 = scalar_lea.vmem %s0, %s75
    %s77 = sadd.s32 0, 0
    %p78 = scmp.lt.s32.totalorder %s77, 0
    %s79 = scalar_select %p78, %s77, 0
    %s80 = smul.u32 2, %s79
    %s81 = sadd.s32 0, 0
    %p82 = scmp.lt.s32.totalorder %s81, 0
    %s83 = scalar_select %p82, %s81, 0
    %s84 = smul.u32 2, %s83
    %s85 = sadd.s32 0, 0
    %s86 = smul.u32 2, %s85
    %p87 = scmp.lt.s32.totalorder %s86, 1
    %s88 = scalar_select %p87, %s86, 1
    %s89 = smul.addr %s88, 8
    %s90 = scalar_lea.vmem %s2, %s89
    %s91 = sadd.s32 0, 0
    %s92 = smul.u32 2, %s91
    %p93 = scmp.eq.s32.totalorder 0, 0
    // Predicated region
    $region18: #{tpu_custom_call.1} parent=1 // pred_check
      %p94 = pneg %p93
    $region19: #{tpu_custom_call.1} parent=1 // pred_check_branch
      %96 = sbr.rel (%p94) target = $region21
    $region20: #{tpu_custom_call.1} parent=1 // pred_region
      %97 = vst [vmem:[#allocation2] sm:$0x1] 0.0
    $region21: #{tpu_custom_call.1} parent=1 // pred_fallthru
      _
    %v98 = vld [vmem:[%s76] sm:$0xff]
    %v99 = vld [vmem:[%s76 + $0x8] sm:$0xff]
    %v100 = vld [vmem:[#allocation3] sm:$0xff]
    %v101 = vld [vmem:[#allocation3 + $0x8] sm:$0xff]
    %v102 = vsub.f32 %v98, %v100
    %v103 = vsub.f32 %v99, %v101
    %v104 = vmul.f32 %v102, %v102
    %v105 = vmul.f32 %v103, %v103
    %v106 = vsub.f32 0.0, %v98
    %v107 = vsub.f32 0.0, %v99
    %v108 = vmax.f32 %v106, 0.0
    %v109 = vmax.f32 %v107, 0.0
    %v110 = vmul.f32 %v108, %v108
    %v111 = vmul.f32 %v109, %v109
    %v112 = vld [vmem:[%s90] sm:$0xff]
    %v113 = vld [vmem:[%s90 + $0x8] sm:$0xff]
    %116 = vrot.lane.b32.xlu0 %v112, 127
    %v117 = vpop.permute.xlu0 %116
    %118 = vrot.lane.b32.xlu0 %v113, 127
    %v119 = vpop.permute.xlu0 %118
    %122 = vxpose.xlu0.b32.start [1/16] %v117, 128
    %123 = vxpose.xlu0.b32.cont [2/16] %v119, 128
    %124 = vxpose.xlu0.b32.cont [3/16] 0.0, 128
    %125 = vxpose.xlu0.b32.cont [4/16] 0.0, 128
    %126 = vxpose.xlu0.b32.cont [5/16] 0.0, 128
    %127 = vxpose.xlu0.b32.cont [6/16] 0.0, 128
    %128 = vxpose.xlu0.b32.cont [7/16] 0.0, 128
    %129 = vxpose.xlu0.b32.cont [8/16] 0.0, 128
    %130 = vxpose.xlu0.b32.cont [9/16] 0.0, 128
    %131 = vxpose.xlu0.b32.cont [10/16] 0.0, 128
    %132 = vxpose.xlu0.b32.cont [11/16] 0.0, 128
    %133 = vxpose.xlu0.b32.cont [12/16] 0.0, 128
    %134 = vxpose.xlu0.b32.cont [13/16] 0.0, 128
    %135 = vxpose.xlu0.b32.cont [14/16] 0.0, 128
    %136 = vxpose.xlu0.b32.cont [15/16] 0.0, 128
    %137 = vxpose.xlu0.b32.end [16/16] 0.0, 128
    %v138 = vpop.trf.xlu0
    %v139 = vpop.trf.xlu0
    %v140 = vpop.trf.xlu0
    %v141 = vpop.trf.xlu0
    %v142 = vpop.trf.xlu0
    %v143 = vpop.trf.xlu0
    %v144 = vpop.trf.xlu0
    %v145 = vpop.trf.xlu0
    %v146 = vpop.trf.xlu0
    %v147 = vpop.trf.xlu0
    %v148 = vpop.trf.xlu0
    %v149 = vpop.trf.xlu0
    %v150 = vpop.trf.xlu0
    %v151 = vpop.trf.xlu0
    %v152 = vpop.trf.xlu0
    %v153 = vpop.trf.xlu0
    %vm154 = vcmask 130048
    %v156 = vsel %vm154, %v138, 0
    %158 = vmatprep.subr.mxu0 0.0
    %159 = vmatpush1.msra.mxu0 %v110
    %160 = vmatprep.subr.mxu0 0.0
    %161 = vmatpush1.msra.mxu0 %v111
    %162 = vmatprep.subr.mxu0 0.0
    %163 = vmatpush1.msra.mxu0 0.0
    %164 = vmatprep.subr.mxu0 0.0
    %165 = vmatpush1.msra.mxu0 0.0
    %166 = vmatprep.subr.mxu0 0.0
    %167 = vmatpush1.msra.mxu0 0.0
    %168 = vmatprep.subr.mxu0 0.0
    %169 = vmatpush1.msra.mxu0 0.0
    %170 = vmatprep.subr.mxu0 0.0
    %171 = vmatpush1.msra.mxu0 0.0
    %172 = vmatprep.subr.mxu0 0.0
    %173 = vmatpush1.msra.mxu0 0.0
    %174 = vmatprep.subr.mxu0 0.0
    %175 = vmatpush1.msra.mxu0 0.0
    %176 = vmatprep.subr.mxu0 0.0
    %177 = vmatpush1.msra.mxu0 0.0
    %178 = vmatprep.subr.mxu0 0.0
    %179 = vmatpush1.msra.mxu0 0.0
    %180 = vmatprep.subr.mxu0 0.0
    %181 = vmatpush1.msra.mxu0 0.0
    %182 = vmatprep.subr.mxu0 0.0
    %183 = vmatpush1.msra.mxu0 0.0
    %184 = vmatprep.subr.mxu0 0.0
    %185 = vmatpush1.msra.mxu0 0.0
    %186 = vmatprep.subr.mxu0 0.0
    %187 = vmatpush1.msra.mxu0 0.0
    %188 = vmatprep.subr.mxu0 0.0
    %189 = vmatpush1.msra.mxu0 0.0
    %190 = vmatprep.subr.mxu0 0.0
    %191 = vmatpush1.msra.mxu0 0.0
    %192 = vmatprep.subr.mxu0 0.0
    %193 = vmatpush1.msra.mxu0 0.0
    %194 = vmatprep.subr.mxu0 0.0
    %195 = vmatpush1.msra.mxu0 0.0
    %196 = vmatprep.subr.mxu0 0.0
    %197 = vmatpush1.msra.mxu0 0.0
    %198 = vmatprep.subr.mxu0 0.0
    %199 = vmatpush1.msra.mxu0 0.0
    %200 = vmatprep.subr.mxu0 0.0
    %201 = vmatpush1.msra.mxu0 0.0
    %202 = vmatprep.subr.mxu0 0.0
    %203 = vmatpush1.msra.mxu0 0.0
    %204 = vmatprep.subr.mxu0 0.0
    %205 = vmatpush1.msra.mxu0 0.0
    %206 = vmatprep.subr.mxu0 0.0
    %207 = vmatpush1.msra.mxu0 0.0
    %208 = vmatprep.subr.mxu0 0.0
    %209 = vmatpush1.msra.mxu0 0.0
    %210 = vmatprep.subr.mxu0 0.0
    %211 = vmatpush1.msra.mxu0 0.0
    %212 = vmatprep.subr.mxu0 0.0
    %213 = vmatpush1.msra.mxu0 0.0
    %214 = vmatprep.subr.mxu0 0.0
    %215 = vmatpush1.msra.mxu0 0.0
    %216 = vmatprep.subr.mxu0 0.0
    %217 = vmatpush1.msra.mxu0 0.0
    %218 = vmatprep.subr.mxu0 0.0
    %219 = vmatpush1.msra.mxu0 0.0
    %220 = vmatprep.subr.mxu0 0.0
    %221 = vmatpush1.msra.mxu0 0.0
    %222 = vmatprep.mubr.f32.mxu0 0.0
    %223 = vmatmul.mubr.f32.gmra.mrb[0].mxu0 %v156
    %v224 = vpop.f32.mrb[0].mxu0
    %v225 = vadd.f32 0.0, %v224
    %v226 = vpop.f32.mrb[0].mxu0
    %227 = vdwg.mxu0
    %228 = vxpose.xlu0.b32.start [1/16] %v112, 128
    %229 = vxpose.xlu0.b32.cont [2/16] %v113, 128
    %230 = vxpose.xlu0.b32.cont [3/16] 0.0, 128
    %231 = vxpose.xlu0.b32.cont [4/16] 0.0, 128
    %232 = vxpose.xlu0.b32.cont [5/16] 0.0, 128
    %233 = vxpose.xlu0.b32.cont [6/16] 0.0, 128
    %234 = vxpose.xlu0.b32.cont [7/16] 0.0, 128
    %235 = vxpose.xlu0.b32.cont [8/16] 0.0, 128
    %236 = vxpose.xlu0.b32.cont [9/16] 0.0, 128
    %237 = vxpose.xlu0.b32.cont [10/16] 0.0, 128
    %238 = vxpose.xlu0.b32.cont [11/16] 0.0, 128
    %239 = vxpose.xlu0.b32.cont [12/16] 0.0, 128
    %240 = vxpose.xlu0.b32.cont [13/16] 0.0, 128
    %241 = vxpose.xlu0.b32.cont [14/16] 0.0, 128
    %242 = vxpose.xlu0.b32.cont [15/16] 0.0, 128
    %243 = vxpose.xlu0.b32.end [16/16] 0.0, 128
    %v244 = vpop.trf.xlu0
    %v245 = vpop.trf.xlu0
    %v246 = vpop.trf.xlu0
    %v247 = vpop.trf.xlu0
    %v248 = vpop.trf.xlu0
    %v249 = vpop.trf.xlu0
    %v250 = vpop.trf.xlu0
    %v251 = vpop.trf.xlu0
    %v252 = vpop.trf.xlu0
    %v253 = vpop.trf.xlu0
    %v254 = vpop.trf.xlu0
    %v255 = vpop.trf.xlu0
    %v256 = vpop.trf.xlu0
    %v257 = vpop.trf.xlu0
    %v258 = vpop.trf.xlu0
    %v259 = vpop.trf.xlu0
    %v261 = vsel %vm154, %v244, 0
    %263 = vmatprep.subr.mxu0 0.0
    %264 = vmatpush1.msra.mxu0 %v104
    %265 = vmatprep.subr.mxu0 0.0
    %266 = vmatpush1.msra.mxu0 %v105
    %267 = vmatprep.subr.mxu0 0.0
    %268 = vmatpush1.msra.mxu0 0.0
    %269 = vmatprep.subr.mxu0 0.0
    %270 = vmatpush1.msra.mxu0 0.0
    %271 = vmatprep.subr.mxu0 0.0
    %272 = vmatpush1.msra.mxu0 0.0
    %273 = vmatprep.subr.mxu0 0.0
    %274 = vmatpush1.msra.mxu0 0.0
    %275 = vmatprep.subr.mxu0 0.0
    %276 = vmatpush1.msra.mxu0 0.0
    %277 = vmatprep.subr.mxu0 0.0
    %278 = vmatpush1.msra.mxu0 0.0
    %279 = vmatprep.subr.mxu0 0.0
    %280 = vmatpush1.msra.mxu0 0.0
    %281 = vmatprep.subr.mxu0 0.0
    %282 = vmatpush1.msra.mxu0 0.0
    %283 = vmatprep.subr.mxu0 0.0
    %284 = vmatpush1.msra.mxu0 0.0
    %285 = vmatprep.subr.mxu0 0.0
    %286 = vmatpush1.msra.mxu0 0.0
    %287 = vmatprep.subr.mxu0 0.0
    %288 = vmatpush1.msra.mxu0 0.0
    %289 = vmatprep.subr.mxu0 0.0
    %290 = vmatpush1.msra.mxu0 0.0
    %291 = vmatprep.subr.mxu0 0.0
    %292 = vmatpush1.msra.mxu0 0.0
    %293 = vmatprep.subr.mxu0 0.0
    %294 = vmatpush1.msra.mxu0 0.0
    %295 = vmatprep.subr.mxu0 0.0
    %296 = vmatpush1.msra.mxu0 0.0
    %297 = vmatprep.subr.mxu0 0.0
    %298 = vmatpush1.msra.mxu0 0.0
    %299 = vmatprep.subr.mxu0 0.0
    %300 = vmatpush1.msra.mxu0 0.0
    %301 = vmatprep.subr.mxu0 0.0
    %302 = vmatpush1.msra.mxu0 0.0
    %303 = vmatprep.subr.mxu0 0.0
    %304 = vmatpush1.msra.mxu0 0.0
    %305 = vmatprep.subr.mxu0 0.0
    %306 = vmatpush1.msra.mxu0 0.0
    %307 = vmatprep.subr.mxu0 0.0
    %308 = vmatpush1.msra.mxu0 0.0
    %309 = vmatprep.subr.mxu0 0.0
    %310 = vmatpush1.msra.mxu0 0.0
    %311 = vmatprep.subr.mxu0 0.0
    %312 = vmatpush1.msra.mxu0 0.0
    %313 = vmatprep.subr.mxu0 0.0
    %314 = vmatpush1.msra.mxu0 0.0
    %315 = vmatprep.subr.mxu0 0.0
    %316 = vmatpush1.msra.mxu0 0.0
    %317 = vmatprep.subr.mxu0 0.0
    %318 = vmatpush1.msra.mxu0 0.0
    %319 = vmatprep.subr.mxu0 0.0
    %320 = vmatpush1.msra.mxu0 0.0
    %321 = vmatprep.subr.mxu0 0.0
    %322 = vmatpush1.msra.mxu0 0.0
    %323 = vmatprep.subr.mxu0 0.0
    %324 = vmatpush1.msra.mxu0 0.0
    %325 = vmatprep.subr.mxu0 0.0
    %326 = vmatpush1.msra.mxu0 0.0
    %327 = vmatprep.mubr.f32.mxu0 0.0
    %328 = vmatmul.mubr.f32.gmra.mrb[0].mxu0 %v261
    %v329 = vpop.f32.mrb[0].mxu0
    %v330 = vadd.f32 %v225, %v329
    %v331 = vpop.f32.mrb[0].mxu0
    %332 = vdwg.mxu0
    %v333 = vld [vmem:[#allocation2] sm:$0x1]
    %v334 = vadd.f32 %v333, %v330
    %335 = vst [vmem:[#allocation2] sm:$0x1] %v334
    // Predicated region
    $region22: #{tpu_custom_call.1} parent=1 // pred_check
      %p336 = pneg %p93
    $region23: #{tpu_custom_call.1} parent=1 // pred_check_branch
      %338 = sbr.rel (%p336) target = $region25
    $region24: #{tpu_custom_call.1} parent=1 // pred_region
      %v339 = vld [vmem:[#allocation2] sm:$0x1]
      %vm340 = vcmask 1040384
      %v341 = vsel %vm340, %v339, 0.0
      %342 = vadd.xlane.f32.xlu0 %v341
      %v343 = vpop.xlane.xlu0 %342
      %v344 = vrot.slane %v343, 4
      %v345 = vadd.f32 %v343, %v344
      %v346 = vrot.slane %v345, 2
      %v347 = vadd.f32 %v345, %v346
      %v348 = vrot.slane %v347, 1
      %v349 = vadd.f32 %v347, %v348
      %s350 = vtos %v349
      %v351 = vstv %s350
      %352 = vst [vmem:[#allocation6] sm:$0x1] %v351
    $region25: #{tpu_custom_call.1} parent=1 // pred_fallthru
      _
    // Predicated region
    $region26: #{tpu_custom_call.1} parent=1 // pred_check
      _
    $region27: #{tpu_custom_call.1} parent=1 // pred_check_branch
      %354 = sbr.rel (0) target = $region29
    $region28: #{tpu_custom_call.1} parent=1 // pred_region
      %s356 = ssub.s32 16, 16
      %357 = vsyncadd [#allocation5], %s356
      %s359 = sshll.u32 [#allocation6], 4
      %s360 = int_to_ptr.vmem [resolvable:$true] %s359
      %362 = dma.vmem_to_hbm [thread:$0]  %s360, 16, %s3, [#allocation5]
    $region29: #{tpu_custom_call.1} parent=1 // pred_fallthru
      _
    // Predicated region
    $region30: #{tpu_custom_call.1} parent=1 // pred_check
      _
    $region31: #{tpu_custom_call.1} parent=1 // pred_check_branch
      %364 = sbr.rel (0) target = $region33
    $region32: #{tpu_custom_call.1} parent=1 // pred_region
      %365 = dma.done [#allocation5], 16
    $region33: #{tpu_custom_call.1} parent=1 // pred_fallthru
      _
    %366 = vsyncpa [#allocation4], 1
    %367 = vsyncpa [#allocation5], 1

</llo_original>
